<compile_context>
chip_gen: v6e
topology: v6e:2x2x1
jax: 0.10.0
libtpu: 0.0.40
codegen_flags: <defaults>
</compile_context>

<pallas_src>
import functools

import jax
import jax.numpy as jnp
from jax import lax
from jax.experimental import pallas as pl
from jax.experimental.pallas import tpu as pltpu

LANE = 128
SUB = 8
STRIP = 128                     # rows per in-kernel strip (bounds live ranges)
MAX_TILE_ROWS_REDUCE = 4096     # 2 MiB/input block -> 8 MiB w/ double buffering
MAX_TILE_ROWS_NONE = 2048       # + output double buffer -> 6 MiB (v5e-safe)
_PAD_LOGIT = -1.0e4             # pad: bce=0, sigmoid=0, |z-p|=0 -> loss == 0


# ---------------------------------------------------------------------------
# Fused elementwise QFocal math (f32, one exp per element).
# ---------------------------------------------------------------------------
def _qfocal_elementwise(x, z, gamma, alpha):
    e = jnp.exp(-jnp.abs(x))                        # reused for BCE and sigmoid
    bce = jnp.maximum(x, 0.0) - x * z + jnp.log1p(e)

    # sigmoid(x) = where(x>=0, 1, e) / (1+e); EUP approx reciprocal refined
    # with one Newton-Raphson step (VPU only) to ~full f32 precision.
    d = 1.0 + e
    r = pl.reciprocal(d, approx=True)
    r = r * (2.0 - d * r)
    p = jnp.where(x >= 0.0, 1.0, e) * r

    # z*alpha + (1-z)*(1-alpha) == (1-alpha) + z*(2*alpha-1); constants folded.
    alpha_factor = (1.0 - alpha) + z * (2.0 * alpha - 1.0)

    t = jnp.abs(z - p)
    if gamma == 1.5:
        mod = t * jnp.sqrt(t)
    elif gamma == 2.0:
        mod = t * t
    elif gamma == 1.0:
        mod = t
    elif gamma == 0.5:
        mod = jnp.sqrt(t)
    else:
        mod = t ** gamma                            # generic fallback (EUP log+exp)
    return bce * (alpha_factor * mod)


def _strip_loss(pred_ref, true_ref, start, nrows, gamma, alpha, valid_rows):
    """Loss for rows [start, start+nrows) of the current block.

    valid_rows (static int or None): rows >= valid_rows are OOB garbage of a
    partial last block and are zeroed before any accumulation.
    """
    x = pred_ref[pl.ds(start, nrows), :].astype(jnp.float32)
    z = true_ref[pl.ds(start, nrows), :].astype(jnp.float32)
    loss = _qfocal_elementwise(x, z, gamma, alpha)
    if valid_rows is not None:
        ridx = start + lax.broadcasted_iota(jnp.int32, (nrows, LANE), 0)
        loss = jnp.where(ridx < valid_rows, loss, 0.0)
    return loss


def _strip_partial(loss):
    """Reduce an (nrows,128) strip to an (8,128) partial sum (VALU adds only)."""
    nrows = loss.shape[0]
    if nrows % SUB == 0:
        return loss.reshape(nrows // SUB, SUB, LANE).sum(axis=0)
    # Rare tiny-block case (rows < 8): cross-sublane reduce into row 0.
    colsum = jnp.broadcast_to(loss.sum(axis=0, keepdims=True), (SUB, LANE))
    row0 = lax.broadcasted_iota(jnp.int32, (SUB, LANE), 0) == 0
    return jnp.where(row0, colsum, 0.0)


def _tile_partial(pred_ref, true_ref, tile_rows, gamma, alpha, valid_rows):
    """(8,128) partial sum of the whole block, processed in 128-row strips."""
    if tile_rows <= STRIP or tile_rows % STRIP != 0:
        return _strip_partial(
            _strip_loss(pred_ref, true_ref, 0, tile_rows, gamma, alpha, valid_rows))

    nstrips = tile_rows // STRIP

    def body(s, acc):
        start = pl.multiple_of(s * STRIP, STRIP)
        loss = _strip_loss(pred_ref, true_ref, start, STRIP, gamma, alpha, valid_rows)
        return acc + _strip_partial(loss)

    return lax.fori_loop(0, nstrips, body, jnp.zeros((SUB, LANE), jnp.float32))


# ---------------------------------------------------------------------------
# Kernels.
# ---------------------------------------------------------------------------
def _qfocal_partial_kernel(pred_ref, true_ref, out_ref, *,
                           gamma, alpha, tile_rows, last_rows):
    """Writes an (8,128) per-block partial sum; final reduction happens in JAX."""
    if last_rows == tile_rows:
        # All blocks are full: mask-free everywhere.
        out_ref[0] = _tile_partial(pred_ref, true_ref, tile_rows, gamma, alpha, None)
    else:
        last = pl.num_programs(0) - 1

        @pl.when(pl.program_id(0) != last)
        def _():
            out_ref[0] = _tile_partial(pred_ref, true_ref, tile_rows,
                                       gamma, alpha, None)

        @pl.when(pl.program_id(0) == last)
        def _():
            out_ref[0] = _tile_partial(pred_ref, true_ref, tile_rows,
                                       gamma, alpha, last_rows)


def _qfocal_none_kernel(pred_ref, true_ref, out_ref, *, gamma, alpha, tile_rows):
    """Elementwise loss; OOB rows of a partial last block are dropped by Pallas."""
    if tile_rows <= STRIP or tile_rows % STRIP != 0:
        out_ref[...] = _strip_loss(pred_ref, true_ref, 0, tile_rows,
                                   gamma, alpha, None)
    else:
        def body(s, carry):
            start = pl.multiple_of(s * STRIP, STRIP)
            out_ref[pl.ds(start, STRIP), :] = _strip_loss(
                pred_ref, true_ref, start, STRIP, gamma, alpha, None)
            return carry

        lax.fori_loop(0, tile_rows // STRIP, body, 0)


# ---------------------------------------------------------------------------
# Wrapper.
# ---------------------------------------------------------------------------
def _round_up(x, m):
    return ((x + m - 1) // m) * m


def _sublane_granule(*dtypes):
    """Block-row granule respecting sub-32-bit sublane packing (8/16/32)."""
    g = SUB
    for dt in dtypes:
        bits = jnp.dtype(dt).itemsize * 8
        g = max(g, SUB * 32 // bits)
    return g


def _pick_tile_rows(rows, granule, max_tile):
    """Block rows: prefer >= 2 grid blocks so both v7x TensorCores get work."""
    if rows <= granule:
        return rows                                  # single (full-dim) block
    half = -(-rows // 2)
    unit = STRIP if half > STRIP else granule        # strip-friendly big blocks
    tile = min(_round_up(half, unit), max_tile)
    if tile >= rows:
        return rows
    return tile


def qfocal_loss(pred, true, gamma=1.5, alpha=0.25, reduction='mean'):
    """Fused QFocalLoss forward. pred/true: same shape, any rank/float dtype."""
    assert pred.shape == true.shape
    assert reduction in ('mean', 'sum', 'none')
    gamma = float(gamma)
    alpha = float(alpha)
    n = int(pred.size)
    orig_shape = pred.shape

    rows = pl.cdiv(n, LANE)
    padded_n = rows * LANE

    def to_slab(a, pad_value):
        flat = a.reshape(-1)                         # no copy for contiguous input
        if padded_n != n:                            # ragged tail: pad < 128 elems
            flat = jnp.pad(flat, (0, padded_n - n), constant_values=pad_value)
        return flat.reshape(rows, LANE)

    p_slab = to_slab(pred, _PAD_LOGIT)               # pad contributes exactly 0 loss
    t_slab = to_slab(true, 0)

    granule = _sublane_granule(pred.dtype, true.dtype)
    max_tile = MAX_TILE_ROWS_NONE if reduction == 'none' else MAX_TILE_ROWS_REDUCE
    tile_rows = _pick_tile_rows(rows, granule, max_tile)
    grid = pl.cdiv(rows, tile_rows)
    last_rows = rows - (grid - 1) * tile_rows        # valid rows in last block

    in_specs = [
        pl.BlockSpec((tile_rows, LANE), lambda i: (i, 0)),
        pl.BlockSpec((tile_rows, LANE), lambda i: (i, 0)),
    ]
    params = pltpu.CompilerParams(dimension_semantics=("parallel",))

    if reduction == 'none':
        # TODO(synk): 'none' always returns float32; emit input dtype if halving
        # writeback matters more than matching the f32 compute dtype.
        kernel = functools.partial(_qfocal_none_kernel, gamma=gamma, alpha=alpha,
                                   tile_rows=tile_rows)
        out = pl.pallas_call(
            kernel,
            out_shape=jax.ShapeDtypeStruct((rows, LANE), jnp.float32),
            grid=(grid,),
            in_specs=in_specs,
            out_specs=pl.BlockSpec((tile_rows, LANE), lambda i: (i, 0)),
            compiler_params=params,
        )(p_slab, t_slab)
        flat = out.reshape(-1)
        if padded_n != n:
            flat = flat[:n]
        return flat.reshape(orig_shape)

    kernel = functools.partial(_qfocal_partial_kernel, gamma=gamma, alpha=alpha,
                               tile_rows=tile_rows, last_rows=last_rows)
    partials = pl.pallas_call(
        kernel,
        out_shape=jax.ShapeDtypeStruct((grid, SUB, LANE), jnp.float32),
        grid=(grid,),
        in_specs=in_specs,
        out_specs=pl.BlockSpec((1, SUB, LANE), lambda i: (i, 0, 0)),
        compiler_params=params,
    )(p_slab, t_slab)

    total = jnp.sum(partials)                        # tiny cross-block reduction
    if reduction == 'mean':
        return total / jnp.float32(n)
    return total                                     # reduction == 'sum'


# ---------------------------------------------------------------------------
# Pure-JAX reference for verification.
# ---------------------------------------------------------------------------
def _reference(pred, true, gamma=1.5, alpha=0.25, reduction='mean'):
    x = pred.astype(jnp.float32)
    z = true.astype(jnp.float32)
    bce = jnp.maximum(x, 0.0) - x * z + jnp.log1p(jnp.exp(-jnp.abs(x)))
    p = jax.nn.sigmoid(x)
    af = z * alpha + (1.0 - z) * (1.0 - alpha)
    mf = jnp.abs(z - p) ** gamma
    loss = bce * af * mf
    if reduction == 'mean':
        return jnp.mean(loss)
    if reduction == 'sum':
        return jnp.sum(loss)
    return loss


if __name__ == "__main__":
    key = jax.random.PRNGKey(0)
    k1, k2, k3, k4, k5, k6 = jax.random.split(key, 6)

    # Primary: NCHW-style logits / quality-focal targets in [0, 1].
    pred = jax.random.normal(k1, (2, 4, 16, 16), dtype=jnp.float32)
    true = jax.random.uniform(k2, (2, 4, 16, 16), dtype=jnp.float32)
    for red in ('mean', 'sum', 'none'):
        out = jax.block_until_ready(qfocal_loss(pred, true, reduction=red))
        ref = _reference(pred, true, reduction=red)
        assert out.shape == ref.shape, (red, out.shape, ref.shape)
        assert jnp.allclose(out, ref, rtol=1e-4, atol=1e-5), (red, out, ref)

    # Ragged size (n % 128 != 0): exercises the <128-element safe-pad tail.
    pred_r = jax.random.normal(k3, (3, 5, 7), dtype=jnp.float32)
    true_r = jax.random.uniform(k4, (3, 5, 7), dtype=jnp.float32)
    for red in ('mean', 'sum', 'none'):
        out_r = jax.block_until_ready(qfocal_loss(pred_r, true_r, reduction=red))
        ref_r = _reference(pred_r, true_r, reduction=red)
        assert jnp.allclose(out_r, ref_r, rtol=1e-4, atol=1e-5), (red, out_r, ref_r)

    # Larger shape: exercises the strip fori_loop, the megacore split (grid=2)
    # and the masked partial last block.
    pred_l = jax.random.normal(k5, (2, 8, 48, 48), dtype=jnp.float32)
    true_l = jax.random.uniform(k6, (2, 8, 48, 48), dtype=jnp.float32)
    for red in ('mean', 'sum'):
        out_l = jax.block_until_ready(qfocal_loss(pred_l, true_l, reduction=red))
        ref_l = _reference(pred_l, true_l, reduction=red)
        assert jnp.allclose(out_l, ref_l, rtol=1e-4, atol=1e-5), (red, out_l, ref_l)

    print("KERNEL_OK")
</pallas_src>

<mosaic_0001>
module attributes {stable_mosaic.version = 11 : i64} {
  func.func @_qfocal_partial_kernel(%arg0: i32, %arg1: memref<8x128xf32, #tpu.memory_space<vmem>>, %arg2: memref<8x128xf32, #tpu.memory_space<vmem>>, %arg3: memref<1x8x128xf32, #tpu.memory_space<vmem>>) attributes {dimension_semantics = [#tpu.dimension_semantics<parallel>], iteration_bounds = array<i64: 2>, scalar_prefetch = 0 : i64, scratch_operands = 0 : i64, tpu.core_type = #tpu.core_type<tc>, window_params = [{transform_indices = @transform_0, window_bounds = array<i64: 8, 128>}, {transform_indices = @transform_1, window_bounds = array<i64: 8, 128>}, {transform_indices = @transform_2, window_bounds = array<i64: 1, 8, 128>}]} {
    %c0 = arith.constant 0 : index
    %c0_0 = arith.constant 0 : index
    %0 = vector.load %arg1[%c0, %c0_0] : memref<8x128xf32, #tpu.memory_space<vmem>>, vector<8x128xf32>
    %c0_1 = arith.constant 0 : index
    %c0_2 = arith.constant 0 : index
    %1 = vector.load %arg2[%c0_1, %c0_2] : memref<8x128xf32, #tpu.memory_space<vmem>>, vector<8x128xf32>
    %2 = math.absf %0 : vector<8x128xf32>
    %cst = arith.constant 0.000000e+00 : f32
    %3 = vector.broadcast %cst : f32 to vector<8x128xf32>
    %4 = arith.subf %3, %2 : vector<8x128xf32>
    %5 = math.exp %4 : vector<8x128xf32>
    %cst_3 = arith.constant 0.000000e+00 : f32
    %6 = vector.broadcast %cst_3 : f32 to vector<8x128xf32>
    %7 = arith.maximumf %0, %6 : vector<8x128xf32>
    %8 = arith.mulf %0, %1 : vector<8x128xf32>
    %9 = arith.subf %7, %8 : vector<8x128xf32>
    %10 = math.log1p %5 : vector<8x128xf32>
    %11 = arith.addf %9, %10 : vector<8x128xf32>
    %cst_4 = arith.constant 1.000000e+00 : f32
    %12 = vector.broadcast %cst_4 : f32 to vector<8x128xf32>
    %13 = arith.addf %12, %5 : vector<8x128xf32>
    %14 = tpu.reciprocal %13 {approx = true} : vector<8x128xf32> -> vector<8x128xf32>
    %15 = arith.mulf %13, %14 : vector<8x128xf32>
    %cst_5 = arith.constant 2.000000e+00 : f32
    %16 = vector.broadcast %cst_5 : f32 to vector<8x128xf32>
    %17 = arith.subf %16, %15 : vector<8x128xf32>
    %18 = arith.mulf %14, %17 : vector<8x128xf32>
    %cst_6 = arith.constant 0.000000e+00 : f32
    %19 = vector.broadcast %cst_6 : f32 to vector<8x128xf32>
    %20 = arith.cmpf oge, %0, %19 : vector<8x128xf32>
    %cst_7 = arith.constant 1.000000e+00 : f32
    %21 = vector.broadcast %cst_7 : f32 to vector<8x128xf32>
    %22 = arith.select %20, %21, %5 : vector<8x128xi1>, vector<8x128xf32>
    %23 = arith.mulf %22, %18 : vector<8x128xf32>
    %cst_8 = arith.constant -5.000000e-01 : f32
    %24 = vector.broadcast %cst_8 : f32 to vector<8x128xf32>
    %25 = arith.mulf %1, %24 : vector<8x128xf32>
    %cst_9 = arith.constant 7.500000e-01 : f32
    %26 = vector.broadcast %cst_9 : f32 to vector<8x128xf32>
    %27 = arith.addf %26, %25 : vector<8x128xf32>
    %28 = arith.subf %1, %23 : vector<8x128xf32>
    %29 = math.absf %28 : vector<8x128xf32>
    %30 = math.sqrt %29 : vector<8x128xf32>
    %31 = arith.mulf %29, %30 : vector<8x128xf32>
    %32 = arith.mulf %27, %31 : vector<8x128xf32>
    %33 = arith.mulf %11, %32 : vector<8x128xf32>
    %34 = vector.shape_cast %33 : vector<8x128xf32> to vector<1x8x128xf32>
    %cst_10 = arith.constant dense<0.000000e+00> : vector<8x128xf32>
    %35 = vector.multi_reduction <add>, %34, %cst_10 [0] : vector<1x8x128xf32> to vector<8x128xf32>
    %c0_11 = arith.constant 0 : index
    %c0_12 = arith.constant 0 : index
    %c0_13 = arith.constant 0 : index
    %36 = vector.load %arg3[%c0_11, %c0_12, %c0_13] : memref<1x8x128xf32, #tpu.memory_space<vmem>>, vector<1x8x128xf32>
    %37 = vector.shape_cast %36 : vector<1x8x128xf32> to vector<8x128xf32>
    %38 = vector.shape_cast %35 : vector<8x128xf32> to vector<1x8x128xf32>
    tpu.vector_store %arg3[%c0_11, %c0_12, %c0_13], %38 {strides = array<i32>} : memref<1x8x128xf32, #tpu.memory_space<vmem>>, vector<1x8x128xf32>,
    return
  }
  func.func @transform_0(%arg0: i32) -> (i32, i32) {
    %c0_i32 = arith.constant 0 : i32
    %c0_i32_0 = arith.constant 0 : i32
    return %arg0, %c0_i32 : i32, i32
  }
  func.func @transform_1(%arg0: i32) -> (i32, i32) {
    %c0_i32 = arith.constant 0 : i32
    %c0_i32_0 = arith.constant 0 : i32
    return %arg0, %c0_i32 : i32, i32
  }
  func.func @transform_2(%arg0: i32) -> (i32, i32, i32) {
    %c0_i32 = arith.constant 0 : i32
    %c0_i32_0 = arith.constant 0 : i32
    %c0_i32_1 = arith.constant 0 : i32
    return %arg0, %c0_i32, %c0_i32_0 : i32, i32, i32
  }
}

</mosaic_0001>

<llo_original>
// kernel: tpu_custom_call.1
$region0: #{tpu_custom_call.1}
  #allocation0 [shape = 'u32[]', space=smem, size = 0x4, offset = 0x4, fixed_abs, tag = 'smem constant byte address 0x4 - core index']
  #allocation1 [shape = 'u32[144,128]{1,0:T(1,128)}', space=vmem, size = 0x12000, scoped, tag = 'internal scratch']
  %s0 = inlined_call_operand.hbm [shape: f32[16,128], index: 0, kind: input, shape index: {}]
  %s1 = inlined_call_operand.hbm [shape: f32[16,128], index: 1, kind: input, shape index: {}]
  %s2 = inlined_call_operand.hbm [shape: f32[2,8,128], index: 2, kind: output, shape index: {}]
  %s3 = sld [smem:[#allocation0]]
  $region49: #{tpu_custom_call.1} parent=0
    _
  %s5 = ssub.s32 1, %s3
  %s6 = scalar_select 0, %s5, %s3
  $region1: #{tpu_custom_call.1} parent=0
    #allocation2 [shape = 'u8[8192]{0}', space=vmem, size = 0x2000, scoped, tag = 'input window, operand 0']
    #allocation3 [shape = 's32[2]{0}', space=sflag, size = 0x8, scoped, tag = 'scoped memory for tpu_custom_call.1']
    #allocation4 [shape = 's32[2]{0}', space=sflag, size = 0x8, scoped, tag = 'scoped memory for tpu_custom_call.1']
    #allocation5 [shape = 'u8[8192]{0}', space=vmem, size = 0x2000, scoped, tag = 'input window, operand 1']
    #allocation6 [shape = 's32[2]{0}', space=sflag, size = 0x8, scoped, tag = 'scoped memory for tpu_custom_call.1']
    #allocation7 [shape = 'u8[8192]{0}', space=vmem, size = 0x2000, scoped, tag = 'output window, operand 0']
    %7 = vsyncpa [#allocation3], 0
    %s8 = scalar_lea.sflag [#allocation3], 1
    %9 = vsyncpa %s8, 0
    %10 = vsyncpa [#allocation6], 0
    %s11 = scalar_lea.sflag [#allocation6], 1
    %12 = vsyncpa %s11, 0
    %13 = vsyncpa [#allocation4], 0
    %s14 = scalar_lea.sflag [#allocation4], 1
    %15 = vsyncpa %s14, 0
    loop: start=0, step=1, limit=4
    $region2: #{tpu_custom_call.1} parent=1 // loop_pre_header
      _
    $region3: #{tpu_custom_call.1} parent=1 // loop_header
      %s17 = sphi 0, %s21
      %p18 = scmp.ge.s32.totalorder %s17, 4
      %s27 = sphi 0, %s29
      %s30 = sphi 0, %s27
      %s31 = sphi 0, %s30
      %s47 = sphi 0, %s31
      %s53 = sphi 0, %s55
      %s56 = sphi 0, %s53
      %s57 = sphi 0, %s56
      %s73 = sphi 0, %s57
      %s79 = sphi 0, %s81
      %s82 = sphi 0, %s79
      %s83 = sphi 0, %s82
      %s99 = sphi 0, %s83
    $region4: #{tpu_custom_call.1} parent=1 // loop_header_branch
      %20 = sbr.rel (%p18) target = $region8
    $region5: #{tpu_custom_call.1} parent=1 // loop_body
      %s22 = ssub.s32 %s17, 1
      %s23 = ssub.s32 %s17, 2
      %s24 = sadd.s32 %s17, 1
      %s25 = ssub.s32 %s17, %s24
      %p26 = scmp.eq.s32.totalorder %s25, 0
      %s28 = sadd.s32 %s27, 1
      %s29 = scalar_select %p26, %s27, %s28
      %p32 = pneg %p26
      %p33 = scmp.eq.s32.totalorder %s17, 1
      %p34 = por %p32, %p33
      %p35 = scmp.ne.s32.totalorder %s27, %s30
      %p36 = scmp.eq.s32.totalorder %s17, 0
      %p37 = por %p35, %p36
      %p38 = scmp.ne.s32.totalorder %s27, %s30
      %p39 = scmp.eq.s32.totalorder %s22, 1
      %p40 = por %p38, %p39
      %p41 = scmp.ne.s32.totalorder %s30, %s31
      %p42 = scmp.eq.s32.totalorder %s22, 0
      %p43 = por %p41, %p42
      %p44 = scmp.ne.s32.totalorder %s30, %s31
      %p45 = scmp.eq.s32.totalorder %s23, 1
      %p46 = por %p44, %p45
      %p48 = scmp.ne.s32.totalorder %s31, %s47
      %p49 = scmp.eq.s32.totalorder %s23, 0
      %p50 = por %p48, %p49
      %s51 = ssub.s32 %s17, %s24
      %p52 = scmp.eq.s32.totalorder %s51, 0
      %s54 = sadd.s32 %s53, 1
      %s55 = scalar_select %p52, %s53, %s54
      %p58 = pneg %p52
      %p59 = scmp.eq.s32.totalorder %s17, 1
      %p60 = por %p58, %p59
      %p61 = scmp.ne.s32.totalorder %s53, %s56
      %p62 = scmp.eq.s32.totalorder %s17, 0
      %p63 = por %p61, %p62
      %p64 = scmp.ne.s32.totalorder %s53, %s56
      %p65 = scmp.eq.s32.totalorder %s22, 1
      %p66 = por %p64, %p65
      %p67 = scmp.ne.s32.totalorder %s56, %s57
      %p68 = scmp.eq.s32.totalorder %s22, 0
      %p69 = por %p67, %p68
      %p70 = scmp.ne.s32.totalorder %s56, %s57
      %p71 = scmp.eq.s32.totalorder %s23, 1
      %p72 = por %p70, %p71
      %p74 = scmp.ne.s32.totalorder %s57, %s73
      %p75 = scmp.eq.s32.totalorder %s23, 0
      %p76 = por %p74, %p75
      %s77 = ssub.s32 %s17, %s24
      %p78 = scmp.eq.s32.totalorder %s77, 0
      %s80 = sadd.s32 %s79, 1
      %s81 = scalar_select %p78, %s79, %s80
      %p84 = pneg %p78
      %p85 = scmp.eq.s32.totalorder %s17, 1
      %p86 = por %p84, %p85
      %p87 = scmp.ne.s32.totalorder %s79, %s82
      %p88 = scmp.eq.s32.totalorder %s17, 0
      %p89 = por %p87, %p88
      %p90 = scmp.ne.s32.totalorder %s79, %s82
      %p91 = scmp.eq.s32.totalorder %s22, 1
      %p92 = por %p90, %p91
      %p93 = scmp.ne.s32.totalorder %s82, %s83
      %p94 = scmp.eq.s32.totalorder %s22, 0
      %p95 = por %p93, %p94
      %p96 = scmp.ne.s32.totalorder %s82, %s83
      %p97 = scmp.eq.s32.totalorder %s23, 1
      %p98 = por %p96, %p97
      %p100 = scmp.ne.s32.totalorder %s83, %s99
      %p101 = scmp.eq.s32.totalorder %s23, 0
      %p102 = por %p100, %p101
      %p103 = scmp.le.s32.totalorder 1, %s17
      %p104 = scmp.lt.s32.totalorder %s17, 3
      %p105 = pnand %p103, %p104
      %p106 = pneg %p105
      // Predicated region
      $region9: #{tpu_custom_call.1} parent=5 // pred_check
        _
      $region10: #{tpu_custom_call.1} parent=5 // pred_check_branch
        %108 = sbr.rel (%p105) target = $region12
      $region11: #{tpu_custom_call.1} parent=5 // pred_region
        %s109 = ssub.s32 %s17, 1
      $region12: #{tpu_custom_call.1} parent=5 // pred_fallthru
        _
      %p110 = scmp.lt.s32.totalorder %s17, 2
      // Predicated region
      $region13: #{tpu_custom_call.1} parent=5 // pred_check
        %p111 = pneg %p110
      $region14: #{tpu_custom_call.1} parent=5 // pred_check_branch
        %113 = sbr.rel (%p111) target = $region16
      $region15: #{tpu_custom_call.1} parent=5 // pred_region
        // Predicated region
        $region17: #{tpu_custom_call.1} parent=15 // pred_check
          %p114 = pneg %p37
        $region18: #{tpu_custom_call.1} parent=15 // pred_check_branch
          %116 = sbr.rel (%p114) target = $region20
        $region19: #{tpu_custom_call.1} parent=15 // pred_region
          %s117 = sand.u32 %s27, 1
          %s118 = scalar_lea.sflag [#allocation3], %s117
          %s119 = sand.u32 %s27, 1
          %s120 = smul.addr %s119, 8
          %s121 = scalar_lea.vmem [#allocation2], %s120
          %s123 = ssub.s32 128, 128
          %124 = vsyncadd %s118, %s123
          %s125 = smul.addr %s17, 128
          %s126 = scalar_lea.hbm %s0, %s125
          %s128 = sshll.u32 %s121, 4
          %s129 = int_to_ptr.vmem [resolvable:$true] %s128
          %131 = dma.hbm_to_vmem [thread:$0]  %s126, 128, %s129, %s118
        $region20: #{tpu_custom_call.1} parent=15 // pred_fallthru
          _
        // Predicated region
        $region21: #{tpu_custom_call.1} parent=15 // pred_check
          %p132 = pneg %p63
        $region22: #{tpu_custom_call.1} parent=15 // pred_check_branch
          %134 = sbr.rel (%p132) target = $region24
        $region23: #{tpu_custom_call.1} parent=15 // pred_region
          %s135 = sand.u32 %s53, 1
          %s136 = scalar_lea.sflag [#allocation6], %s135
          %s137 = sand.u32 %s53, 1
          %s138 = smul.addr %s137, 8
          %s139 = scalar_lea.vmem [#allocation5], %s138
          %s141 = ssub.s32 128, 128
          %142 = vsyncadd %s136, %s141
          %s143 = smul.addr %s17, 128
          %s144 = scalar_lea.hbm %s1, %s143
          %s146 = sshll.u32 %s139, 4
          %s147 = int_to_ptr.vmem [resolvable:$true] %s146
          %149 = dma.hbm_to_vmem [thread:$0]  %s144, 128, %s147, %s136
        $region24: #{tpu_custom_call.1} parent=15 // pred_fallthru
          _
      $region16: #{tpu_custom_call.1} parent=5 // pred_fallthru
        _
      %p150 = scmp.le.s32.totalorder 1, %s17
      %p151 = scmp.lt.s32.totalorder %s17, 3
      %p152 = pnand %p150, %p151
      %p153 = pneg %p152
      // Predicated region
      $region25: #{tpu_custom_call.1} parent=5 // pred_check
        _
      $region26: #{tpu_custom_call.1} parent=5 // pred_check_branch
        %155 = sbr.rel (%p152) target = $region28
      $region27: #{tpu_custom_call.1} parent=5 // pred_region
        %s156 = ssub.s32 %s17, 1
        %s157 = sand.u32 %s30, 1
        %s158 = scalar_lea.sflag [#allocation3], %s157
        %s159 = sand.u32 %s30, 1
        %s160 = smul.addr %s159, 8
        %s161 = scalar_lea.vmem [#allocation2], %s160
        // Predicated region
        $region29: #{tpu_custom_call.1} parent=27 // pred_check
          %p162 = pneg %p43
        $region30: #{tpu_custom_call.1} parent=27 // pred_check_branch
          %164 = sbr.rel (%p162) target = $region32
        $region31: #{tpu_custom_call.1} parent=27 // pred_region
          %165 = dma.done %s158, 128
        $region32: #{tpu_custom_call.1} parent=27 // pred_fallthru
          _
        %s166 = sand.u32 %s56, 1
        %s167 = scalar_lea.sflag [#allocation6], %s166
        %s168 = sand.u32 %s56, 1
        %s169 = smul.addr %s168, 8
        %s170 = scalar_lea.vmem [#allocation5], %s169
        // Predicated region
        $region33: #{tpu_custom_call.1} parent=27 // pred_check
          %p171 = pneg %p69
        $region34: #{tpu_custom_call.1} parent=27 // pred_check_branch
          %173 = sbr.rel (%p171) target = $region36
        $region35: #{tpu_custom_call.1} parent=27 // pred_region
          %174 = dma.done %s167, 128
        $region36: #{tpu_custom_call.1} parent=27 // pred_fallthru
          _
        %s175 = sand.u32 %s30, 1
        %s176 = scalar_lea.sflag [#allocation3], %s175
        %s177 = sand.u32 %s30, 1
        %s178 = smul.addr %s177, 8
        %s179 = scalar_lea.vmem [#allocation2], %s178
        %p180 = pneg %p43
        %p181 = pneg %p40
        %s182 = sand.u32 %s56, 1
        %s183 = scalar_lea.sflag [#allocation6], %s182
        %s184 = sand.u32 %s56, 1
        %s185 = smul.addr %s184, 8
        %s186 = scalar_lea.vmem [#allocation5], %s185
        %p187 = pneg %p69
        %p188 = pneg %p66
        %p189 = pneg %p95
        %p190 = pneg %p92
        %s191 = sand.u32 %s82, 1
        %s192 = scalar_lea.sflag [#allocation4], %s191
        %s193 = sand.u32 %s82, 1
        %s194 = smul.addr %s193, 8
        %s195 = scalar_lea.vmem [#allocation7], %s194
        %v196 = vld [vmem:[%s161] sm:$0xff]
        %v197 = vld [vmem:[%s170] sm:$0xff]
        %v198 = vand.u32 2147483647, %v196
        %v199 = vsub.f32 0.0, %v198
        %v200 = vmul.f32 %v199, 1.442695
        %v201 = vpow.pop %v200
        %v202 = vmax.f32 %v196, 0.0
        %v203 = vmul.f32 %v196, %v197
        %v204 = vsub.f32 %v202, %v203
        %v205 = vadd.f32 %v201, 1.0
        %v206 = vlog2.pop %v205
        %v207 = vmul.f32 %v206, 0.6931472
        %v208 = vmul.f32 -0.5, %v201
        %v209 = vadd.f32 %v208, 1.0
        %v210 = vmul.f32 %v209, %v201
        %v211 = vand.u32 2147483647, %v201
        %vm212 = vcmp.lt.f32.partialorder %v211, 0.0004427343
        %v213 = vsel %vm212, %v210, %v207
        %v214 = vadd.f32 %v204, %v213
        %v215 = vadd.f32 %v201, 1.0
        %v216 = vrcp.pop %v215
        %v217 = vmul.f32 %v215, %v216
        %v218 = vsub.f32 2.0, %v217
        %v219 = vmul.f32 %v216, %v218
        %vm220 = vcmp.ge.f32.partialorder %v196, 0.0
        %v221 = vsel %vm220, 1.0, %v201
        %v222 = vmul.f32 %v221, %v219
        %v223 = vmul.f32 %v197, -0.5
        %v224 = vadd.f32 %v223, 0.75
        %v225 = vsub.f32 %v197, %v222
        %v226 = vand.u32 2147483647, %v225
        %v227 = vrsqrt.pop %v226
        %v228 = vmul.f32 %v226, %v227
        %vm229 = vcmp.eq.f32.partialorder %v226, inf
        %v230 = vsel %vm229, %v226, %v228
        %vm231 = vcmp.eq.f32.partialorder %v226, 0.0
        %v232 = vand.u32 %v226, 2147483648
        %v233 = vsel %vm231, %v232, %v230
        %v234 = vmul.f32 %v226, %v233
        %v235 = vmul.f32 %v224, %v234
        %v236 = vmul.f32 %v214, %v235
        %v237 = vadd.f32 %v236, 0.0
        %238 = vst [vmem:[%s195] sm:$0xff] %v237
        %s239 = sand.u32 %s82, 1
        %s240 = scalar_lea.sflag [#allocation4], %s239
        %s241 = sand.u32 %s82, 1
        %s242 = smul.addr %s241, 8
        %s243 = scalar_lea.vmem [#allocation7], %s242
        // Predicated region
        $region37: #{tpu_custom_call.1} parent=27 // pred_check
          %p244 = pneg %p92
        $region38: #{tpu_custom_call.1} parent=27 // pred_check_branch
          %246 = sbr.rel (%p244) target = $region40
        $region39: #{tpu_custom_call.1} parent=27 // pred_region
          %s248 = ssub.s32 128, 128
          %249 = vsyncadd %s240, %s248
          %s250 = smul.addr %s22, 128
          %s251 = scalar_lea.hbm %s2, %s250
          %s253 = sshll.u32 %s243, 4
          %s254 = int_to_ptr.vmem [resolvable:$true] %s253
          %256 = dma.vmem_to_hbm [thread:$0]  %s254, 128, %s251, %s240
        $region40: #{tpu_custom_call.1} parent=27 // pred_fallthru
          _
      $region28: #{tpu_custom_call.1} parent=5 // pred_fallthru
        _
      %p257 = scmp.le.s32.totalorder 2, %s17
      // Predicated region
      $region41: #{tpu_custom_call.1} parent=5 // pred_check
        %p258 = pneg %p257
      $region42: #{tpu_custom_call.1} parent=5 // pred_check_branch
        %260 = sbr.rel (%p258) target = $region44
      $region43: #{tpu_custom_call.1} parent=5 // pred_region
        %s261 = ssub.s32 %s17, 2
        // Predicated region
        $region45: #{tpu_custom_call.1} parent=43 // pred_check
          %p262 = pneg %p98
        $region46: #{tpu_custom_call.1} parent=43 // pred_check_branch
          %264 = sbr.rel (%p262) target = $region48
        $region47: #{tpu_custom_call.1} parent=43 // pred_region
          %s265 = sand.u32 %s83, 1
          %s266 = scalar_lea.sflag [#allocation4], %s265
          %s267 = sand.u32 %s83, 1
          %s268 = smul.addr %s267, 8
          %s269 = scalar_lea.vmem [#allocation7], %s268
          %270 = dma.done %s266, 128
        $region48: #{tpu_custom_call.1} parent=43 // pred_fallthru
          _
      $region44: #{tpu_custom_call.1} parent=5 // pred_fallthru
        _
    $region6: #{tpu_custom_call.1} parent=1 // loop_footer
      %s21 = sadd.s32 1, %s17
    $region7: #{tpu_custom_call.1} parent=1 // loop_footer_branch
      %16 = sbr.rel target = $region3
    $region8: #{tpu_custom_call.1} parent=1 // loop_exit
      _
    %271 = vsyncpa [#allocation3], 1
    %s272 = scalar_lea.sflag [#allocation3], 1
    %273 = vsyncpa %s272, 1
    %274 = vsyncpa [#allocation6], 1
    %s275 = scalar_lea.sflag [#allocation6], 1
    %276 = vsyncpa %s275, 1
    %277 = vsyncpa [#allocation4], 1
    %s278 = scalar_lea.sflag [#allocation4], 1
    %279 = vsyncpa %s278, 1

</llo_original>
